<compile_context>
chip_gen: v7x
topology: tpu7x:2x2x1
jax: 0.10.0
libtpu: 0.0.40
codegen_flags: <defaults>
</compile_context>

<pallas_src>
import jax
import jax.numpy as jnp
from jax.experimental import pallas as pl
from jax.experimental.pallas import tpu as pltpu


def lbs_kernel(a_ref, w_ref, vh_ref, out_ref):
    """One (vertex-tile, frame) step of linear blend skinning.

    a_ref   : (1, 16, J)  transposed transforms for this frame,
                          a_ref[0, d*4 + k, j] == A[frame, j, k, d]   (f32)
    w_ref   : (J, TM)     transposed skin weights for this vertex tile
    vh_ref  : (4, TM)     transposed homogeneous vertices [x; y; z; 1] (f32)
    out_ref : (1, 4, TM)  transposed posed homogeneous vertices (f32)
    """
    a = a_ref[0]                                    # (16, J)  f32
    w = w_ref[...].astype(jnp.float32)              # (J, TM)  (bf16 -> f32)
    vh = vh_ref[...]                                # (4, TM)  f32

    # Blend joint transforms for every vertex in the tile (lane-dense output):
    #   t[d*4 + k, n] = sum_j A[j, k, d] * w[j, n]
    t = jnp.dot(a, w, preferred_element_type=jnp.float32)   # (16, TM)

    # Apply the blended 4x4:  out[k, n] = sum_d t[d*4 + k, n] * vh[d, n]
    # Contiguous 4-row sublane slices + broadcast rows; no lane shuffles.
    out = t[0:4, :] * vh[0:1, :]
    for d in range(1, 4):
        out = out + t[4 * d:4 * (d + 1), :] * vh[d:d + 1, :]

    out_ref[0] = out.astype(out_ref.dtype)


def lbs_pallas(canonical_vertices, lbs_weights, joint_transforms, *,
               tile_m=1024, weights_dtype=jnp.bfloat16):
    """Linear blend skinning for F frames via a Pallas TPU kernel.

    canonical_vertices : f32 [1, N, 3]
    lbs_weights        : f32 [N, J]            (rows sum to 1)
    joint_transforms   : f32 [J, 4, 4] or [F, J, 4, 4]

    returns posed vertices, f32 [F, N, 3]
    """
    assert tile_m % 128 == 0, "tile_m must be a multiple of 128 (lane width)"

    verts = canonical_vertices[0].astype(jnp.float32)          # [N, 3]
    N = verts.shape[0]
    J = lbs_weights.shape[1]
    if joint_transforms.ndim == 3:
        joint_transforms = joint_transforms[None]
    F = joint_transforms.shape[0]

    # Pad the vertex (lane) axis up to a multiple of tile_m.
    n_tiles = pl.cdiv(N, tile_m)
    n_pad = n_tiles * tile_m

    # --- transposed, lane-dense host-side layouts (thin JAX glue) ----------
    # weights: [J, N_pad], padded columns are zero -> padded output is zero.
    w_t = jnp.zeros((J, n_pad), weights_dtype)
    w_t = w_t.at[:, :N].set(lbs_weights.T.astype(weights_dtype))

    # homogeneous vertices: [4, N_pad] rows = x, y, z, 1
    vh_t = jnp.zeros((4, n_pad), jnp.float32)
    vh_t = vh_t.at[:3, :N].set(verts.T)
    vh_t = vh_t.at[3, :N].set(1.0)

    # transforms: [F, 16, J] with row index r = d*4 + k, value A[f, j, k, d]
    a_t = jnp.transpose(joint_transforms.astype(jnp.float32),
                        (0, 3, 2, 1)).reshape(F, 16, J)

    grid = (n_tiles, F)   # frame axis innermost -> weights tile reused per frame
    out = pl.pallas_call(
        lbs_kernel,
        out_shape=jax.ShapeDtypeStruct((F, 4, n_pad), jnp.float32),
        grid=grid,
        in_specs=[
            pl.BlockSpec((1, 16, J), lambda i, f: (f, 0, 0)),   # transforms (per frame)
            pl.BlockSpec((J, tile_m), lambda i, f: (0, i)),     # weights tile (frame-invariant)
            pl.BlockSpec((4, tile_m), lambda i, f: (0, i)),     # homog. vertices tile
        ],
        out_specs=pl.BlockSpec((1, 4, tile_m), lambda i, f: (f, 0, i)),
        compiler_params=pltpu.CompilerParams(
            dimension_semantics=("parallel", "arbitrary"),
        ),
    )(a_t, w_t, vh_t)

    # Undo the transpose / padding in the wrapper: [F, N, 3]
    return jnp.transpose(out[:, :3, :N], (0, 2, 1))


def lbs_reference(canonical_vertices, lbs_weights, joint_transforms):
    """Pure-JAX reference for the same LBS math."""
    verts = canonical_vertices[0]                                        # [N, 3]
    N = verts.shape[0]
    vh = jnp.concatenate([verts, jnp.ones((N, 1), jnp.float32)], axis=1)  # [N, 4]
    if joint_transforms.ndim == 3:
        joint_transforms = joint_transforms[None]
    t = jnp.einsum("nj,fjkd->fnkd", lbs_weights, joint_transforms)       # [F, N, 4, 4]
    posed = jnp.einsum("fnkd,nd->fnk", t, vh)                            # [F, N, 4]
    return posed[..., :3]                                                # [F, N, 3]


def make_inputs(key, n_verts=300, n_joints=24, n_frames=3):
    k1, k2, k3, k4 = jax.random.split(key, 4)

    # Canonical mesh vertices [1, N, 3].
    canonical_vertices = jax.random.normal(k1, (1, n_verts, 3), jnp.float32)

    # Skinning weights [N, J], rows normalized to sum to 1.
    logits = jax.random.normal(k2, (n_verts, n_joints), jnp.float32)
    lbs_weights = jax.nn.softmax(logits, axis=-1)

    # Per-frame, per-joint rigid-ish transforms [F, J, 4, 4].
    lin = 0.1 * jax.random.normal(k3, (n_frames, n_joints, 3, 3), jnp.float32) + jnp.eye(3)
    trans = jax.random.normal(k4, (n_frames, n_joints, 3, 1), jnp.float32)
    top = jnp.concatenate([lin, trans], axis=3)                          # [F, J, 3, 4]
    bottom = jnp.broadcast_to(
        jnp.array([0.0, 0.0, 0.0, 1.0], jnp.float32), (n_frames, n_joints, 1, 4))
    joint_transforms = jnp.concatenate([top, bottom], axis=2)            # [F, J, 4, 4]

    return canonical_vertices, lbs_weights, joint_transforms


if __name__ == "__main__":
    key = jax.random.PRNGKey(0)
    n_verts, n_joints, n_frames = 300, 24, 3
    canonical_vertices, lbs_weights, joint_transforms = make_inputs(
        key, n_verts=n_verts, n_joints=n_joints, n_frames=n_frames)

    expected = lbs_reference(canonical_vertices, lbs_weights, joint_transforms)

    # f32 weights path (exact): tight tolerance.
    posed_f32 = lbs_pallas(canonical_vertices, lbs_weights, joint_transforms,
                           tile_m=256, weights_dtype=jnp.float32)
    posed_f32 = jax.block_until_ready(posed_f32)
    assert posed_f32.shape == (n_frames, n_verts, 3)
    assert jnp.allclose(posed_f32, expected, atol=1e-4, rtol=1e-4), \
        "f32 mismatch vs reference"

    # bf16 weights path (halved HBM traffic): widened tolerance.
    posed_bf16 = lbs_pallas(canonical_vertices, lbs_weights, joint_transforms,
                            tile_m=256, weights_dtype=jnp.bfloat16)
    posed_bf16 = jax.block_until_ready(posed_bf16)
    assert posed_bf16.shape == (n_frames, n_verts, 3)
    max_err = float(jnp.max(jnp.abs(posed_bf16 - expected)))
    assert max_err < 5e-2, f"bf16 mismatch vs reference (max err {max_err})"

    print("KERNEL_OK")
</pallas_src>

<mosaic_0001>
module attributes {stable_mosaic.version = 11 : i64} {
  func.func @lbs_kernel(%arg0: i32, %arg1: i32, %arg2: memref<1x16x24xf32, #tpu.memory_space<vmem>>, %arg3: memref<24x256xf32, #tpu.memory_space<vmem>>, %arg4: memref<4x256xf32, #tpu.memory_space<vmem>>, %arg5: memref<1x4x256xf32, #tpu.memory_space<vmem>>) attributes {dimension_semantics = [#tpu.dimension_semantics<parallel>, #tpu.dimension_semantics<arbitrary>], iteration_bounds = array<i64: 2, 3>, scalar_prefetch = 0 : i64, scratch_operands = 0 : i64, tpu.core_type = #tpu.core_type<tc>, window_params = [{transform_indices = @transform_0, window_bounds = array<i64: 1, 16, 24>}, {transform_indices = @transform_1, window_bounds = array<i64: 24, 256>}, {transform_indices = @transform_2, window_bounds = array<i64: 4, 256>}, {transform_indices = @transform_3, window_bounds = array<i64: 1, 4, 256>}]} {
    %c0 = arith.constant 0 : index
    %c0_0 = arith.constant 0 : index
    %c0_1 = arith.constant 0 : index
    %0 = vector.load %arg2[%c0, %c0_0, %c0_1] : memref<1x16x24xf32, #tpu.memory_space<vmem>>, vector<1x16x24xf32>
    %1 = vector.shape_cast %0 : vector<1x16x24xf32> to vector<16x24xf32>
    %c0_2 = arith.constant 0 : index
    %c0_3 = arith.constant 0 : index
    %2 = vector.load %arg3[%c0_2, %c0_3] : memref<24x256xf32, #tpu.memory_space<vmem>>, vector<24x256xf32>
    %c0_4 = arith.constant 0 : index
    %c0_5 = arith.constant 0 : index
    %3 = vector.load %arg4[%c0_4, %c0_5] : memref<4x256xf32, #tpu.memory_space<vmem>>, vector<4x256xf32>
    %cst = arith.constant dense<0.000000e+00> : vector<16x256xf32>
    %4 = tpu.matmul %1, %2, %cst {dimension_numbers = #tpu.dot_dimension_numbers<[1], [0], [0], [1], [0, 0, 1, 1], [], []>} : vector<16x24xf32>, vector<24x256xf32>, vector<16x256xf32> -> vector<16x256xf32>
    %5 = vector.extract_strided_slice %4 {offsets = [0, 0], sizes = [4, 256], strides = [1, 1]} : vector<16x256xf32> to vector<4x256xf32>
    %6 = vector.extract_strided_slice %3 {offsets = [0, 0], sizes = [1, 256], strides = [1, 1]} : vector<4x256xf32> to vector<1x256xf32>
    %7 = vector.broadcast %6 : vector<1x256xf32> to vector<4x256xf32>
    %8 = arith.mulf %5, %7 : vector<4x256xf32>
    %9 = vector.extract_strided_slice %4 {offsets = [4, 0], sizes = [4, 256], strides = [1, 1]} : vector<16x256xf32> to vector<4x256xf32>
    %10 = vector.extract_strided_slice %3 {offsets = [1, 0], sizes = [1, 256], strides = [1, 1]} : vector<4x256xf32> to vector<1x256xf32>
    %11 = vector.broadcast %10 : vector<1x256xf32> to vector<4x256xf32>
    %12 = arith.mulf %9, %11 : vector<4x256xf32>
    %13 = arith.addf %8, %12 : vector<4x256xf32>
    %14 = vector.extract_strided_slice %4 {offsets = [8, 0], sizes = [4, 256], strides = [1, 1]} : vector<16x256xf32> to vector<4x256xf32>
    %15 = vector.extract_strided_slice %3 {offsets = [2, 0], sizes = [1, 256], strides = [1, 1]} : vector<4x256xf32> to vector<1x256xf32>
    %16 = vector.broadcast %15 : vector<1x256xf32> to vector<4x256xf32>
    %17 = arith.mulf %14, %16 : vector<4x256xf32>
    %18 = arith.addf %13, %17 : vector<4x256xf32>
    %19 = vector.extract_strided_slice %4 {offsets = [12, 0], sizes = [4, 256], strides = [1, 1]} : vector<16x256xf32> to vector<4x256xf32>
    %20 = vector.extract_strided_slice %3 {offsets = [3, 0], sizes = [1, 256], strides = [1, 1]} : vector<4x256xf32> to vector<1x256xf32>
    %21 = vector.broadcast %20 : vector<1x256xf32> to vector<4x256xf32>
    %22 = arith.mulf %19, %21 : vector<4x256xf32>
    %23 = arith.addf %18, %22 : vector<4x256xf32>
    %c0_6 = arith.constant 0 : index
    %c0_7 = arith.constant 0 : index
    %c0_8 = arith.constant 0 : index
    %24 = vector.load %arg5[%c0_6, %c0_7, %c0_8] : memref<1x4x256xf32, #tpu.memory_space<vmem>>, vector<1x4x256xf32>
    %25 = vector.shape_cast %24 : vector<1x4x256xf32> to vector<4x256xf32>
    %26 = vector.shape_cast %23 : vector<4x256xf32> to vector<1x4x256xf32>
    tpu.vector_store %arg5[%c0_6, %c0_7, %c0_8], %26 {strides = array<i32>} : memref<1x4x256xf32, #tpu.memory_space<vmem>>, vector<1x4x256xf32>,
    return
  }
  func.func @transform_0(%arg0: i32, %arg1: i32) -> (i32, i32, i32) {
    %c0_i32 = arith.constant 0 : i32
    %c0_i32_0 = arith.constant 0 : i32
    %c0_i32_1 = arith.constant 0 : i32
    return %arg1, %c0_i32, %c0_i32_0 : i32, i32, i32
  }
  func.func @transform_1(%arg0: i32, %arg1: i32) -> (i32, i32) {
    %c0_i32 = arith.constant 0 : i32
    %c0_i32_0 = arith.constant 0 : i32
    return %c0_i32, %arg0 : i32, i32
  }
  func.func @transform_2(%arg0: i32, %arg1: i32) -> (i32, i32) {
    %c0_i32 = arith.constant 0 : i32
    %c0_i32_0 = arith.constant 0 : i32
    return %c0_i32, %arg0 : i32, i32
  }
  func.func @transform_3(%arg0: i32, %arg1: i32) -> (i32, i32, i32) {
    %c0_i32 = arith.constant 0 : i32
    %c0_i32_0 = arith.constant 0 : i32
    return %arg1, %c0_i32, %arg0 : i32, i32, i32
  }
}

</mosaic_0001>

<llo_original>
// kernel: tpu_custom_call.1
$region0: #{tpu_custom_call.1}
  #allocation0 [shape = 'u32[]', space=smem, size = 0x4, offset = 0x4, fixed_abs, tag = 'smem constant byte address 0x4 - core index']
  #allocation1 [shape = 'u32[144,128]{1,0:T(1,128)}', space=vmem, size = 0x12000, scoped, tag = 'internal scratch']
  %s0 = inlined_call_operand.hbm [shape: f32[3,16,24], index: 0, kind: input, shape index: {}]
  %s1 = inlined_call_operand.hbm [shape: f32[24,512], index: 1, kind: input, shape index: {}]
  %s2 = inlined_call_operand.hbm [shape: f32[4,512], index: 2, kind: input, shape index: {}]
  %s3 = inlined_call_operand.hbm [shape: f32[3,4,512], index: 3, kind: output, shape index: {}]
  %s4 = sld [smem:[#allocation0]]
  $region57: #{tpu_custom_call.1} parent=0
    _
  %s6 = ssub.s32 1, %s4
  %s7 = scalar_select 0, %s6, %s4
  $region1: #{tpu_custom_call.1} parent=0
    #allocation2 [shape = 'u8[16384]{0}', space=vmem, size = 0x4000, scoped, tag = 'input window, operand 0']
    #allocation3 [shape = 's32[2]{0}', space=sflag, size = 0x8, scoped, tag = 'scoped memory for tpu_custom_call.1']
    #allocation4 [shape = 's32[2]{0}', space=sflag, size = 0x8, scoped, tag = 'scoped memory for tpu_custom_call.1']
    #allocation5 [shape = 'u8[49152]{0}', space=vmem, size = 0xc000, scoped, tag = 'input window, operand 1']
    #allocation6 [shape = 's32[2]{0}', space=sflag, size = 0x8, scoped, tag = 'scoped memory for tpu_custom_call.1']
    #allocation7 [shape = 'u8[8192]{0}', space=vmem, size = 0x2000, scoped, tag = 'input window, operand 2']
    #allocation8 [shape = 'u8[8192]{0}', space=vmem, size = 0x2000, scoped, tag = 'output window, operand 0']
    %8 = vsyncpa [#allocation3], 0
    %s9 = scalar_lea.sflag [#allocation3], 1
    %10 = vsyncpa %s9, 0
    %11 = vsyncpa [#allocation6], 0
    %s12 = scalar_lea.sflag [#allocation6], 1
    %13 = vsyncpa %s12, 0
    %14 = vsyncpa [#allocation4], 0
    %s15 = scalar_lea.sflag [#allocation4], 1
    %16 = vsyncpa %s15, 0
    loop: start=0, step=1, limit=8
    $region2: #{tpu_custom_call.1} parent=1 // loop_pre_header
      _
    $region3: #{tpu_custom_call.1} parent=1 // loop_header
      %s18 = sphi 0, %s22
      %p19 = scmp.ge.s32.totalorder %s18, 8
      %s25 = sphi 0, %s37
      %s26 = sphi 0, %s33
      %s27 = sphi 0, %s25
      %s28 = sphi 0, %s26
      %s29 = sphi 0, %s27
      %s30 = sphi 0, %s28
      %s40 = sphi 0, %s42
      %s43 = sphi 0, %s40
      %s44 = sphi 0, %s43
      %s60 = sphi 0, %s44
      %s66 = sphi 0, %s68
      %s69 = sphi 0, %s66
      %s70 = sphi 0, %s69
      %s86 = sphi 0, %s70
      %s92 = sphi 0, %s94
      %s95 = sphi 0, %s92
      %s96 = sphi 0, %s95
      %s112 = sphi 0, %s96
      %s120 = sphi 0, %s122
      %s123 = sphi 0, %s120
      %s124 = sphi 0, %s123
      %s140 = sphi 0, %s124
    $region4: #{tpu_custom_call.1} parent=1 // loop_header_branch
      %21 = sbr.rel (%p19) target = $region8
    $region5: #{tpu_custom_call.1} parent=1 // loop_body
      %s23 = ssub.s32 %s18, 1
      %s24 = ssub.s32 %s18, 2
      %s31 = sadd.s32 1, %s26
      %p32 = scmp.ge.s32.totalorder %s31, 3
      %s33 = scalar_select %p32, 0, %s31
      %s34 = sadd.s32 1, %s25
      %s35 = scalar_select %p32, %s34, %s25
      %p36 = scmp.ge.s32.totalorder %s35, 2
      %s37 = scalar_select %p36, 0, %s35
      %s38 = ssub.s32 %s26, %s33
      %p39 = scmp.eq.s32.totalorder %s38, 0
      %s41 = sadd.s32 %s40, 1
      %s42 = scalar_select %p39, %s40, %s41
      %p45 = pneg %p39
      %p46 = scmp.eq.s32.totalorder %s18, 5
      %p47 = por %p45, %p46
      %p48 = scmp.ne.s32.totalorder %s40, %s43
      %p49 = scmp.eq.s32.totalorder %s18, 0
      %p50 = por %p48, %p49
      %p51 = scmp.ne.s32.totalorder %s40, %s43
      %p52 = scmp.eq.s32.totalorder %s23, 5
      %p53 = por %p51, %p52
      %p54 = scmp.ne.s32.totalorder %s43, %s44
      %p55 = scmp.eq.s32.totalorder %s23, 0
      %p56 = por %p54, %p55
      %p57 = scmp.ne.s32.totalorder %s43, %s44
      %p58 = scmp.eq.s32.totalorder %s24, 5
      %p59 = por %p57, %p58
      %p61 = scmp.ne.s32.totalorder %s44, %s60
      %p62 = scmp.eq.s32.totalorder %s24, 0
      %p63 = por %p61, %p62
      %s64 = ssub.s32 %s25, %s37
      %p65 = scmp.eq.s32.totalorder %s64, 0
      %s67 = sadd.s32 %s66, 1
      %s68 = scalar_select %p65, %s66, %s67
      %p71 = pneg %p65
      %p72 = scmp.eq.s32.totalorder %s18, 5
      %p73 = por %p71, %p72
      %p74 = scmp.ne.s32.totalorder %s66, %s69
      %p75 = scmp.eq.s32.totalorder %s18, 0
      %p76 = por %p74, %p75
      %p77 = scmp.ne.s32.totalorder %s66, %s69
      %p78 = scmp.eq.s32.totalorder %s23, 5
      %p79 = por %p77, %p78
      %p80 = scmp.ne.s32.totalorder %s69, %s70
      %p81 = scmp.eq.s32.totalorder %s23, 0
      %p82 = por %p80, %p81
      %p83 = scmp.ne.s32.totalorder %s69, %s70
      %p84 = scmp.eq.s32.totalorder %s24, 5
      %p85 = por %p83, %p84
      %p87 = scmp.ne.s32.totalorder %s70, %s86
      %p88 = scmp.eq.s32.totalorder %s24, 0
      %p89 = por %p87, %p88
      %s90 = ssub.s32 %s25, %s37
      %p91 = scmp.eq.s32.totalorder %s90, 0
      %s93 = sadd.s32 %s92, 1
      %s94 = scalar_select %p91, %s92, %s93
      %p97 = pneg %p91
      %p98 = scmp.eq.s32.totalorder %s18, 5
      %p99 = por %p97, %p98
      %p100 = scmp.ne.s32.totalorder %s92, %s95
      %p101 = scmp.eq.s32.totalorder %s18, 0
      %p102 = por %p100, %p101
      %p103 = scmp.ne.s32.totalorder %s92, %s95
      %p104 = scmp.eq.s32.totalorder %s23, 5
      %p105 = por %p103, %p104
      %p106 = scmp.ne.s32.totalorder %s95, %s96
      %p107 = scmp.eq.s32.totalorder %s23, 0
      %p108 = por %p106, %p107
      %p109 = scmp.ne.s32.totalorder %s95, %s96
      %p110 = scmp.eq.s32.totalorder %s24, 5
      %p111 = por %p109, %p110
      %p113 = scmp.ne.s32.totalorder %s96, %s112
      %p114 = scmp.eq.s32.totalorder %s24, 0
      %p115 = por %p113, %p114
      %s116 = ssub.s32 %s26, %s33
      %s117 = ssub.s32 %s25, %s37
      %s118 = sor.u32 %s116, %s117
      %p119 = scmp.eq.s32.totalorder %s118, 0
      %s121 = sadd.s32 %s120, 1
      %s122 = scalar_select %p119, %s120, %s121
      %p125 = pneg %p119
      %p126 = scmp.eq.s32.totalorder %s18, 5
      %p127 = por %p125, %p126
      %p128 = scmp.ne.s32.totalorder %s120, %s123
      %p129 = scmp.eq.s32.totalorder %s18, 0
      %p130 = por %p128, %p129
      %p131 = scmp.ne.s32.totalorder %s120, %s123
      %p132 = scmp.eq.s32.totalorder %s23, 5
      %p133 = por %p131, %p132
      %p134 = scmp.ne.s32.totalorder %s123, %s124
      %p135 = scmp.eq.s32.totalorder %s23, 0
      %p136 = por %p134, %p135
      %p137 = scmp.ne.s32.totalorder %s123, %s124
      %p138 = scmp.eq.s32.totalorder %s24, 5
      %p139 = por %p137, %p138
      %p141 = scmp.ne.s32.totalorder %s124, %s140
      %p142 = scmp.eq.s32.totalorder %s24, 0
      %p143 = por %p141, %p142
      %p144 = scmp.le.s32.totalorder 1, %s18
      %p145 = scmp.lt.s32.totalorder %s18, 7
      %p146 = pnand %p144, %p145
      %p147 = pneg %p146
      // Predicated region
      $region9: #{tpu_custom_call.1} parent=5 // pred_check
        _
      $region10: #{tpu_custom_call.1} parent=5 // pred_check_branch
        %149 = sbr.rel (%p146) target = $region12
      $region11: #{tpu_custom_call.1} parent=5 // pred_region
        %s150 = ssub.s32 %s18, 1
      $region12: #{tpu_custom_call.1} parent=5 // pred_fallthru
        _
      %p151 = scmp.lt.s32.totalorder %s18, 6
      // Predicated region
      $region13: #{tpu_custom_call.1} parent=5 // pred_check
        %p152 = pneg %p151
      $region14: #{tpu_custom_call.1} parent=5 // pred_check_branch
        %154 = sbr.rel (%p152) target = $region16
      $region15: #{tpu_custom_call.1} parent=5 // pred_region
        // Predicated region
        $region17: #{tpu_custom_call.1} parent=15 // pred_check
          %p155 = pneg %p50
        $region18: #{tpu_custom_call.1} parent=15 // pred_check_branch
          %157 = sbr.rel (%p155) target = $region20
        $region19: #{tpu_custom_call.1} parent=15 // pred_region
          %s158 = sand.u32 %s40, 1
          %s159 = scalar_lea.sflag [#allocation3], %s158
          %s160 = sand.u32 %s40, 1
          %s161 = smul.addr %s160, 16
          %s162 = scalar_lea.vmem [#allocation2], %s161
          %s164 = ssub.s32 256, 256
          %165 = vsyncadd %s159, %s164
          %s166 = smul.addr %s26, 2
          %s167 = smul.addr %s166, 128
          %s168 = scalar_lea.hbm %s0, %s167
          %s169 = sshll.u32 %s162, 4
          %s170 = int_to_ptr.vmem [resolvable:$true] %s169
          %175 = dma.hbm_to_vmem [thread:$0]  %s168, 256, %s170, %s159, 128, 128, 8
        $region20: #{tpu_custom_call.1} parent=15 // pred_fallthru
          _
        // Predicated region
        $region21: #{tpu_custom_call.1} parent=15 // pred_check
          %p176 = pneg %p76
        $region22: #{tpu_custom_call.1} parent=15 // pred_check_branch
          %178 = sbr.rel (%p176) target = $region24
        $region23: #{tpu_custom_call.1} parent=15 // pred_region
          %s179 = sand.u32 %s18, 1
          %s180 = scalar_lea.sflag [#allocation6], %s179
          %s181 = sand.u32 %s66, 1
          %s182 = smul.addr %s181, 48
          %s183 = scalar_lea.vmem [#allocation5], %s182
          %s184 = smul.u32 2, %s25
          %s186 = ssub.s32 768, 768
          %187 = vsyncadd %s180, %s186
          %s188 = smul.addr %s184, 128
          %s189 = scalar_lea.hbm %s1, %s188
          %s190 = sshll.u32 %s183, 4
          %s191 = int_to_ptr.vmem [resolvable:$true] %s190
          %196 = dma.hbm_to_vmem [thread:$0]  %s189, 768, %s191, %s180, 512, 256, 16
        $region24: #{tpu_custom_call.1} parent=15 // pred_fallthru
          _
        // Predicated region
        $region25: #{tpu_custom_call.1} parent=15 // pred_check
          %p197 = pneg %p102
        $region26: #{tpu_custom_call.1} parent=15 // pred_check_branch
          %199 = sbr.rel (%p197) target = $region28
        $region27: #{tpu_custom_call.1} parent=15 // pred_region
          %s200 = sand.u32 %s18, 1
          %s201 = scalar_lea.sflag [#allocation6], %s200
          %s202 = sand.u32 %s92, 1
          %s203 = smul.addr %s202, 8
          %s204 = scalar_lea.vmem [#allocation7], %s203
          %s205 = smul.u32 2, %s25
          %s207 = ssub.s32 128, 128
          %208 = vsyncadd %s201, %s207
          %s209 = smul.addr %s205, 64
          %s210 = scalar_lea.hbm %s2, %s209
          %s212 = sshll.u32 %s204, 4
          %s213 = int_to_ptr.vmem [resolvable:$true] %s212
          %215 = dma.hbm_to_vmem [thread:$0]  %s210, 128, %s213, %s201
        $region28: #{tpu_custom_call.1} parent=15 // pred_fallthru
          _
      $region16: #{tpu_custom_call.1} parent=5 // pred_fallthru
        _
      %p216 = scmp.le.s32.totalorder 1, %s18
      %p217 = scmp.lt.s32.totalorder %s18, 7
      %p218 = pnand %p216, %p217
      %p219 = pneg %p218
      // Predicated region
      $region29: #{tpu_custom_call.1} parent=5 // pred_check
        _
      $region30: #{tpu_custom_call.1} parent=5 // pred_check_branch
        %221 = sbr.rel (%p218) target = $region32
      $region31: #{tpu_custom_call.1} parent=5 // pred_region
        %s222 = ssub.s32 %s18, 1
        %s223 = sand.u32 %s43, 1
        %s224 = scalar_lea.sflag [#allocation3], %s223
        %s225 = sand.u32 %s43, 1
        %s226 = smul.addr %s225, 16
        %s227 = scalar_lea.vmem [#allocation2], %s226
        // Predicated region
        $region33: #{tpu_custom_call.1} parent=31 // pred_check
          %p228 = pneg %p56
        $region34: #{tpu_custom_call.1} parent=31 // pred_check_branch
          %230 = sbr.rel (%p228) target = $region36
        $region35: #{tpu_custom_call.1} parent=31 // pred_region
          %231 = dma.done %s224, 256
        $region36: #{tpu_custom_call.1} parent=31 // pred_fallthru
          _
        %s232 = sand.u32 %s23, 1
        %s233 = scalar_lea.sflag [#allocation6], %s232
        %s234 = sand.u32 %s69, 1
        %s235 = smul.addr %s234, 48
        %s236 = scalar_lea.vmem [#allocation5], %s235
        // Predicated region
        $region37: #{tpu_custom_call.1} parent=31 // pred_check
          %p237 = pneg %p82
        $region38: #{tpu_custom_call.1} parent=31 // pred_check_branch
          %239 = sbr.rel (%p237) target = $region40
        $region39: #{tpu_custom_call.1} parent=31 // pred_region
          %240 = dma.done %s233, 768
        $region40: #{tpu_custom_call.1} parent=31 // pred_fallthru
          _
        %s241 = sand.u32 %s23, 1
        %s242 = scalar_lea.sflag [#allocation6], %s241
        %s243 = sand.u32 %s95, 1
        %s244 = smul.addr %s243, 8
        %s245 = scalar_lea.vmem [#allocation7], %s244
        // Predicated region
        $region41: #{tpu_custom_call.1} parent=31 // pred_check
          %p246 = pneg %p108
        $region42: #{tpu_custom_call.1} parent=31 // pred_check_branch
          %248 = sbr.rel (%p246) target = $region44
        $region43: #{tpu_custom_call.1} parent=31 // pred_region
          %249 = dma.done %s242, 128
        $region44: #{tpu_custom_call.1} parent=31 // pred_fallthru
          _
        %s250 = sand.u32 %s43, 1
        %s251 = scalar_lea.sflag [#allocation3], %s250
        %s252 = sand.u32 %s43, 1
        %s253 = smul.addr %s252, 16
        %s254 = scalar_lea.vmem [#allocation2], %s253
        %p255 = pneg %p56
        %p256 = pneg %p53
        %s257 = sand.u32 %s23, 1
        %s258 = scalar_lea.sflag [#allocation6], %s257
        %s259 = sand.u32 %s69, 1
        %s260 = smul.addr %s259, 48
        %s261 = scalar_lea.vmem [#allocation5], %s260
        %p262 = pneg %p82
        %p263 = pneg %p79
        %s264 = sand.u32 %s23, 1
        %s265 = scalar_lea.sflag [#allocation6], %s264
        %s266 = sand.u32 %s95, 1
        %s267 = smul.addr %s266, 8
        %s268 = scalar_lea.vmem [#allocation7], %s267
        %p269 = pneg %p108
        %p270 = pneg %p105
        %p271 = pneg %p136
        %p272 = pneg %p133
        %s273 = sand.u32 %s123, 1
        %s274 = scalar_lea.sflag [#allocation4], %s273
        %s275 = sand.u32 %s123, 1
        %s276 = smul.addr %s275, 8
        %s277 = scalar_lea.vmem [#allocation8], %s276
        %s278 = smul.u32 2, %s27
        %s279 = smul.u32 2, %s27
        %s280 = smul.u32 2, %s27
        %v281 = vld [vmem:[%s227] sm:$0xff]
        %v282 = vld [vmem:[%s227 + $0x8] sm:$0xff]
        %v283 = vld [vmem:[%s236] sm:$0xff]
        %v284 = vld [vmem:[%s236 + $0x8] sm:$0xff]
        %v285 = vld [vmem:[%s236 + $0x10] sm:$0xff]
        %v286 = vld [vmem:[%s236 + $0x18] sm:$0xff]
        %v287 = vld [vmem:[%s236 + $0x20] sm:$0xff]
        %v288 = vld [vmem:[%s236 + $0x28] sm:$0xff]
        %v289 = vld [vmem:[%s245] sm:$0xff]
        %vm290 = vcmask 195584
        %v292 = vsel %vm290, %v281, 0
        %v295 = vsel %vm290, %v282, 0
        %297 = vmatprep.subr.mxu0 %v284
        %298 = vmatpush1.msra.mxu0 %v283
        %299 = vmatprep.subr.mxu0 %v286
        %300 = vmatpush1.msra.mxu0 %v285
        %301 = vmatprep.subr.mxu0 %v288
        %302 = vmatpush1.msra.mxu0 %v287
        %303 = vmatprep.subr.mxu0 0.0
        %304 = vmatpush1.msra.mxu0 0.0
        %305 = vmatprep.subr.mxu0 0.0
        %306 = vmatpush1.msra.mxu0 0.0
        %307 = vmatprep.subr.mxu0 0.0
        %308 = vmatpush1.msra.mxu0 0.0
        %309 = vmatprep.subr.mxu0 0.0
        %310 = vmatpush1.msra.mxu0 0.0
        %311 = vmatprep.subr.mxu0 0.0
        %312 = vmatpush1.msra.mxu0 0.0
        %313 = vmatprep.subr.mxu0 0.0
        %314 = vmatpush1.msra.mxu0 0.0
        %315 = vmatprep.subr.mxu0 0.0
        %316 = vmatpush1.msra.mxu0 0.0
        %317 = vmatprep.subr.mxu0 0.0
        %318 = vmatpush1.msra.mxu0 0.0
        %319 = vmatprep.subr.mxu0 0.0
        %320 = vmatpush1.msra.mxu0 0.0
        %321 = vmatprep.subr.mxu0 0.0
        %322 = vmatpush1.msra.mxu0 0.0
        %323 = vmatprep.subr.mxu0 0.0
        %324 = vmatpush1.msra.mxu0 0.0
        %325 = vmatprep.subr.mxu0 0.0
        %326 = vmatpush1.msra.mxu0 0.0
        %327 = vmatprep.subr.mxu0 0.0
        %328 = vmatpush1.msra.mxu0 0.0
        %329 = vmatprep.subr.mxu0 0.0
        %330 = vmatpush1.msra.mxu0 0.0
        %331 = vmatprep.subr.mxu0 0.0
        %332 = vmatpush1.msra.mxu0 0.0
        %333 = vmatprep.subr.mxu0 0.0
        %334 = vmatpush1.msra.mxu0 0.0
        %335 = vmatprep.subr.mxu0 0.0
        %336 = vmatpush1.msra.mxu0 0.0
        %337 = vmatprep.subr.mxu0 0.0
        %338 = vmatpush1.msra.mxu0 0.0
        %339 = vmatprep.subr.mxu0 0.0
        %340 = vmatpush1.msra.mxu0 0.0
        %341 = vmatprep.subr.mxu0 0.0
        %342 = vmatpush1.msra.mxu0 0.0
        %343 = vmatprep.subr.mxu0 0.0
        %344 = vmatpush1.msra.mxu0 0.0
        %345 = vmatprep.subr.mxu0 0.0
        %346 = vmatpush1.msra.mxu0 0.0
        %347 = vmatprep.subr.mxu0 0.0
        %348 = vmatpush1.msra.mxu0 0.0
        %349 = vmatprep.subr.mxu0 0.0
        %350 = vmatpush1.msra.mxu0 0.0
        %351 = vmatprep.subr.mxu0 0.0
        %352 = vmatpush1.msra.mxu0 0.0
        %353 = vmatprep.subr.mxu0 0.0
        %354 = vmatpush1.msra.mxu0 0.0
        %355 = vmatprep.subr.mxu0 0.0
        %356 = vmatpush1.msra.mxu0 0.0
        %357 = vmatprep.subr.mxu0 0.0
        %358 = vmatpush1.msra.mxu0 0.0
        %359 = vmatprep.subr.mxu0 0.0
        %360 = vmatpush1.msra.mxu0 0.0
        %361 = vmatprep.mubr.f32.mxu0 0.0
        %362 = vmatmul.mubr.f32.gmra.mrb[0].mxu0 %v292
        %v363 = vpop.f32.mrb[0].mxu0
        %v364 = vadd.f32 0.0, %v363
        %v365 = vpop.f32.mrb[0].mxu0
        %v366 = vadd.f32 0.0, %v365
        %367 = vmatprep.mubr.f32.mxu0 0.0
        %368 = vmatmul.mubr.f32.gmra.mrb[0].mxu0 %v295
        %v369 = vpop.f32.mrb[0].mxu0
        %v370 = vadd.f32 0.0, %v369
        %v371 = vpop.f32.mrb[0].mxu0
        %v372 = vadd.f32 0.0, %v371
        %373 = vdwg.mxu0
        %v375 = vlaneseq
        %v376 = vshrl.u32 %v375, 7
        %v377 = vsub.s32 0, %v376
        %v378 = vrot.slane %v289, %v377
        %v379 = vlaneseq
        %v380 = vshrl.u32 %v379, 7
        %v381 = vsub.s32 4, %v380
        %v382 = vrot.slane %v289, %v381
        %v385 = vlaneseq
        %v386 = vshrl.u32 %v385, 7
        %v387 = vsub.s32 0, %v386
        %v388 = vrot.slane %v378, %v387
        %v389 = vlaneseq
        %v390 = vshrl.u32 %v389, 7
        %v391 = vsub.s32 0, %v390
        %v392 = vrot.slane %v382, %v391
        %v393 = vmul.f32 %v364, %v388
        %v394 = vmul.f32 %v366, %v392
        %v395 = vlaneseq
        %v396 = vshrl.u32 %v395, 7
        %v397 = vsub.s32 1, %v396
        %v398 = vrot.slane %v289, %v397
        %v399 = vlaneseq
        %v400 = vshrl.u32 %v399, 7
        %v401 = vsub.s32 5, %v400
        %v402 = vrot.slane %v289, %v401
        %v405 = vlaneseq
        %v406 = vshrl.u32 %v405, 7
        %v407 = vsub.s32 1, %v406
        %v408 = vrot.slane %v398, %v407
        %v409 = vlaneseq
        %v410 = vshrl.u32 %v409, 7
        %v411 = vsub.s32 1, %v410
        %v412 = vrot.slane %v402, %v411
        %v413 = vmul.f32 %v364, %v408
        %v414 = vmul.f32 %v366, %v412
        %v417 = vrot.slane %v413, 4
        %v418 = vrot.slane %v414, 4
        %v421 = vadd.f32 %v393, %v417
        %v422 = vadd.f32 %v394, %v418
        %v423 = vlaneseq
        %v424 = vshrl.u32 %v423, 7
        %v425 = vsub.s32 2, %v424
        %v426 = vrot.slane %v289, %v425
        %v427 = vlaneseq
        %v428 = vshrl.u32 %v427, 7
        %v429 = vsub.s32 6, %v428
        %v430 = vrot.slane %v289, %v429
        %v433 = vlaneseq
        %v434 = vshrl.u32 %v433, 7
        %v435 = vsub.s32 2, %v434
        %v436 = vrot.slane %v426, %v435
        %v437 = vlaneseq
        %v438 = vshrl.u32 %v437, 7
        %v439 = vsub.s32 2, %v438
        %v440 = vrot.slane %v430, %v439
        %v441 = vmul.f32 %v370, %v436
        %v442 = vmul.f32 %v372, %v440
        %v443 = vadd.f32 %v421, %v441
        %v444 = vadd.f32 %v422, %v442
        %v445 = vlaneseq
        %v446 = vshrl.u32 %v445, 7
        %v447 = vsub.s32 3, %v446
        %v448 = vrot.slane %v289, %v447
        %v449 = vlaneseq
        %v450 = vshrl.u32 %v449, 7
        %v451 = vsub.s32 7, %v450
        %v452 = vrot.slane %v289, %v451
        %v455 = vlaneseq
        %v456 = vshrl.u32 %v455, 7
        %v457 = vsub.s32 3, %v456
        %v458 = vrot.slane %v448, %v457
        %v459 = vlaneseq
        %v460 = vshrl.u32 %v459, 7
        %v461 = vsub.s32 3, %v460
        %v462 = vrot.slane %v452, %v461
        %v463 = vmul.f32 %v370, %v458
        %v464 = vmul.f32 %v372, %v462
        %v467 = vrot.slane %v463, 4
        %v468 = vrot.slane %v464, 4
        %v471 = vadd.f32 %v443, %v467
        %v472 = vadd.f32 %v444, %v468
        %v475 = vcombine.low %v471, %v472
        %477 = vst [vmem:[%s277] sm:$0xff] %v475
        %s478 = sand.u32 %s123, 1
        %s479 = scalar_lea.sflag [#allocation4], %s478
        %s480 = sand.u32 %s123, 1
        %s481 = smul.addr %s480, 8
        %s482 = scalar_lea.vmem [#allocation8], %s481
        // Predicated region
        $region45: #{tpu_custom_call.1} parent=31 // pred_check
          %p483 = pneg %p133
        $region46: #{tpu_custom_call.1} parent=31 // pred_check_branch
          %485 = sbr.rel (%p483) target = $region48
        $region47: #{tpu_custom_call.1} parent=31 // pred_region
          %s486 = smul.u32 2, %s27
          %s488 = ssub.s32 128, 128
          %489 = vsyncadd %s479, %s488
          %s490 = smul.addr %s28, 4
          %s491 = sadd.s32 %s486, %s490
          %s492 = smul.addr %s491, 64
          %s493 = scalar_lea.hbm %s3, %s492
          %s495 = sshll.u32 %s482, 4
          %s496 = int_to_ptr.vmem [resolvable:$true] %s495
          %498 = dma.vmem_to_hbm [thread:$0]  %s496, 128, %s493, %s479
        $region48: #{tpu_custom_call.1} parent=31 // pred_fallthru
          _
      $region32: #{tpu_custom_call.1} parent=5 // pred_fallthru
        _
      %p499 = scmp.le.s32.totalorder 2, %s18
      // Predicated region
      $region49: #{tpu_custom_call.1} parent=5 // pred_check
        %p500 = pneg %p499
      $region50: #{tpu_custom_call.1} parent=5 // pred_check_branch
        %502 = sbr.rel (%p500) target = $region52
      $region51: #{tpu_custom_call.1} parent=5 // pred_region
        %s503 = ssub.s32 %s18, 2
        // Predicated region
        $region53: #{tpu_custom_call.1} parent=51 // pred_check
          %p504 = pneg %p139
        $region54: #{tpu_custom_call.1} parent=51 // pred_check_branch
          %506 = sbr.rel (%p504) target = $region56
        $region55: #{tpu_custom_call.1} parent=51 // pred_region
          %s507 = sand.u32 %s124, 1
          %s508 = scalar_lea.sflag [#allocation4], %s507
          %s509 = sand.u32 %s124, 1
          %s510 = smul.addr %s509, 8
          %s511 = scalar_lea.vmem [#allocation8], %s510
          %512 = dma.done %s508, 128
        $region56: #{tpu_custom_call.1} parent=51 // pred_fallthru
          _
      $region52: #{tpu_custom_call.1} parent=5 // pred_fallthru
        _
    $region6: #{tpu_custom_call.1} parent=1 // loop_footer
      %s22 = sadd.s32 1, %s18
    $region7: #{tpu_custom_call.1} parent=1 // loop_footer_branch
      %17 = sbr.rel target = $region3
    $region8: #{tpu_custom_call.1} parent=1 // loop_exit
      _
    %513 = vsyncpa [#allocation3], 1
    %s514 = scalar_lea.sflag [#allocation3], 1
    %515 = vsyncpa %s514, 1
    %516 = vsyncpa [#allocation6], 1
    %s517 = scalar_lea.sflag [#allocation6], 1
    %518 = vsyncpa %s517, 1
    %519 = vsyncpa [#allocation4], 1
    %s520 = scalar_lea.sflag [#allocation4], 1
    %521 = vsyncpa %s520, 1

</llo_original>
